<compile_context>
chip_gen: v7x
topology: tpu7x:2x2x1
jax: 0.10.0
libtpu: 0.0.40
codegen_flags: <defaults>
</compile_context>

<pallas_src>
import math

import jax
import jax.numpy as jnp
from jax.experimental import pallas as pl
from jax.experimental.pallas import tpu as pltpu


def make_pe(d_model: int, dtype=jnp.float32) -> jnp.ndarray:
    """Deterministic buffer identical to the PyTorch __init__ (even->sin, odd->cos)."""
    position = jnp.arange(d_model, dtype=jnp.float32)                     # (d_model,)
    div_term = jnp.exp(
        jnp.arange(0, d_model, 2, dtype=jnp.float32) * (-math.log(10000.0) / d_model)
    )[: d_model // 2]                                                     # (d_model//2,)

    pe = jnp.zeros((d_model,), dtype=jnp.float32)
    pe = pe.at[0::2].set(jnp.sin(position[0::2] * div_term))
    pe = pe.at[1::2].set(jnp.cos(position[1::2] * div_term))
    return pe.reshape(1, d_model).astype(dtype)                           # (1, d_model)


def _pos_enc_kernel(x_ref, pe_ref, o_ref):
    # Broadcast add: (TB, TD) + (1, TD) -> (TB, TD).  Pure VPU elementwise hot path.
    o_ref[...] = x_ref[...] + pe_ref[...]


def _round_up(n: int, m: int) -> int:
    return -(-n // m) * m


_TARGET_TILE_BYTES = 4 * 1024 * 1024    # ~4 MiB of x per tile (review: 2-4 MiB)
_VMEM_LIMIT_BYTES = 32 * 1024 * 1024    # fits v7x's 64 MiB physical; raises v5e/v6e default


def _fold_factor(R: int, D: int) -> int:
    """Smallest k dividing R with (k*D) % 128 == 0 and, ideally, k*D >= 512 lanes."""
    if D % 128 == 0 and D >= 512:
        return 1
    best_aligned = None
    for k in range(1, min(R, 64) + 1):
        if R % k != 0 or (k * D) % 128 != 0:
            continue
        if best_aligned is None:
            best_aligned = k
        if k * D >= 512:
            return k
    return best_aligned if best_aligned is not None else 1


def _choose_tiles(R: int, D: int, itemsize: int):
    # Sublane packing requirement for the tile's row dim (8 f32, 16 bf16, 32 int8).
    packing = 8 * max(1, 4 // itemsize)

    # D-axis tiling fallback: only when even a minimal-row tile over the full D
    # would blow the per-tile budget (extremely wide D).  TD stays a multiple of 128.
    if D <= 128 or packing * D * itemsize <= _TARGET_TILE_BYTES:
        TD = D
    else:
        TD = max(128, (_TARGET_TILE_BYTES // (packing * itemsize)) // 128 * 128)
        if TD >= D:
            TD = D

    # Row tile sized from the byte target (no artificial row cap).
    TB = _TARGET_TILE_BYTES // (TD * itemsize)
    TB = max(packing, (TB // packing) * packing)
    if TB >= R:
        TB = R                                   # full row extent: always a legal block

    # Keep >=2 grid steps when possible so v7x can shard across its 2 TensorCores.
    if pl.cdiv(R, TB) * pl.cdiv(D, TD) < 2 and R >= 2 * packing:
        TB = _round_up(pl.cdiv(R, 2), packing)

    return TB, TD


def positional_encoding(x: jnp.ndarray, pe: jnp.ndarray) -> jnp.ndarray:
    """x: (..., D), pe: (1, D) -> same shape as x."""
    orig_shape = x.shape
    D = orig_shape[-1]
    assert pe.shape == (1, D), f"pe shape {pe.shape} != (1, {D})"
    pe = pe.astype(x.dtype)

    # Flatten all leading dims into one long row axis.
    x2 = x.reshape(-1, D)
    R = x2.shape[0]
    itemsize = jnp.dtype(x2.dtype).itemsize

    # Lane folding: fold k consecutive rows into the lane axis so the output last
    # dim is a large multiple of 128 (unmasked vector stores, smaller grid).
    k = _fold_factor(R, D)
    if k > 1:
        x2 = x2.reshape(R // k, k * D)
        pe = jnp.tile(pe, (1, k))
    R_eff, D_eff = x2.shape

    TB, TD = _choose_tiles(R_eff, D_eff, itemsize)
    grid = (pl.cdiv(R_eff, TB), pl.cdiv(D_eff, TD))

    out = pl.pallas_call(
        _pos_enc_kernel,
        out_shape=jax.ShapeDtypeStruct((R_eff, D_eff), x2.dtype),
        grid=grid,
        in_specs=[
            pl.BlockSpec((TB, TD), lambda i, j: (i, j)),   # streamed tiles of x
            pl.BlockSpec((1, TD), lambda i, j: (0, j)),    # pe: resident along row axis
        ],
        out_specs=pl.BlockSpec((TB, TD), lambda i, j: (i, j)),
        compiler_params=pltpu.CompilerParams(
            dimension_semantics=("parallel", "parallel"),  # v7x: shard over 2 TCs
            vmem_limit_bytes=_VMEM_LIMIT_BYTES,
        ),
        cost_estimate=pl.CostEstimate(
            flops=R * D,
            transcendentals=0,
            bytes_accessed=2 * R * D * itemsize + D_eff * itemsize,
        ),
    )(x2, pe)

    return out.reshape(orig_shape)


if __name__ == "__main__":
    key = jax.random.PRNGKey(0)
    k1, k2, k3 = jax.random.split(key, 3)

    # Case 1: plain (batch, d_model), small hidden not a multiple of 128.
    B, D = 2, 32
    x = jax.random.normal(k1, (B, D), dtype=jnp.float32)
    pe = make_pe(D, dtype=jnp.float32)
    ref = x + pe                                    # reference built before the call
    out = jax.block_until_ready(positional_encoding(x, pe))
    assert out.shape == (B, D)
    assert jnp.allclose(out, ref, atol=1e-6, rtol=1e-6)

    # Case 2: (batch, seq, d_model) with d_model=64 -> exercises lane folding (k*64 % 128 == 0).
    B2, S2, D2 = 4, 8, 64
    x2 = jax.random.normal(k2, (B2, S2, D2), dtype=jnp.float32)
    pe2 = make_pe(D2, dtype=jnp.float32)
    ref2 = x2 + pe2
    out2 = jax.block_until_ready(positional_encoding(x2, pe2))
    assert out2.shape == (B2, S2, D2)
    assert jnp.allclose(out2, ref2, atol=1e-6, rtol=1e-6)

    # Case 3: d_model a multiple of 128 -> folding widens lanes toward 512.
    B3, S3, D3 = 2, 8, 128
    x3 = jax.random.normal(k3, (B3, S3, D3), dtype=jnp.float32)
    pe3 = make_pe(D3, dtype=jnp.float32)
    ref3 = x3 + pe3
    out3 = jax.block_until_ready(positional_encoding(x3, pe3))
    assert out3.shape == (B3, S3, D3)
    assert jnp.allclose(out3, ref3, atol=1e-6, rtol=1e-6)

    print("KERNEL_OK")
</pallas_src>

<mosaic_0001>
module attributes {stable_mosaic.version = 11 : i64} {
  func.func @_pos_enc_kernel(%arg0: i32, %arg1: i32, %arg2: memref<2x32xf32, #tpu.memory_space<vmem>>, %arg3: memref<1x32xf32, #tpu.memory_space<vmem>>, %arg4: memref<2x32xf32, #tpu.memory_space<vmem>>) attributes {dimension_semantics = [#tpu.dimension_semantics<parallel>, #tpu.dimension_semantics<parallel>], iteration_bounds = array<i64: 1, 1>, scalar_prefetch = 0 : i64, scratch_operands = 0 : i64, tpu.core_type = #tpu.core_type<tc>, window_params = [{transform_indices = @transform_0, window_bounds = array<i64: 2, 32>}, {transform_indices = @transform_1, window_bounds = array<i64: 1, 32>}, {transform_indices = @transform_2, window_bounds = array<i64: 2, 32>}]} {
    %c0 = arith.constant 0 : index
    %c0_0 = arith.constant 0 : index
    %0 = vector.load %arg2[%c0, %c0_0] : memref<2x32xf32, #tpu.memory_space<vmem>>, vector<2x32xf32>
    %c0_1 = arith.constant 0 : index
    %c0_2 = arith.constant 0 : index
    %1 = vector.load %arg3[%c0_1, %c0_2] : memref<1x32xf32, #tpu.memory_space<vmem>>, vector<1x32xf32>
    %2 = vector.broadcast %1 : vector<1x32xf32> to vector<2x32xf32>
    %3 = arith.addf %0, %2 : vector<2x32xf32>
    %c0_3 = arith.constant 0 : index
    %c0_4 = arith.constant 0 : index
    %4 = vector.load %arg4[%c0_3, %c0_4] : memref<2x32xf32, #tpu.memory_space<vmem>>, vector<2x32xf32>
    tpu.vector_store %arg4[%c0_3, %c0_4], %3 {strides = array<i32>} : memref<2x32xf32, #tpu.memory_space<vmem>>, vector<2x32xf32>,
    return
  }
  func.func @transform_0(%arg0: i32, %arg1: i32) -> (i32, i32) {
    %c0_i32 = arith.constant 0 : i32
    return %arg0, %arg1 : i32, i32
  }
  func.func @transform_1(%arg0: i32, %arg1: i32) -> (i32, i32) {
    %c0_i32 = arith.constant 0 : i32
    %c0_i32_0 = arith.constant 0 : i32
    return %c0_i32, %arg1 : i32, i32
  }
  func.func @transform_2(%arg0: i32, %arg1: i32) -> (i32, i32) {
    %c0_i32 = arith.constant 0 : i32
    return %arg0, %arg1 : i32, i32
  }
}

</mosaic_0001>

<llo_original>
// kernel: tpu_custom_call.1
$region0: #{tpu_custom_call.1}
  #allocation0 [shape = 'u32[]', space=smem, size = 0x4, offset = 0x4, fixed_abs, tag = 'smem constant byte address 0x4 - core index']
  #allocation1 [shape = 'u32[144,128]{1,0:T(1,128)}', space=vmem, size = 0x12000, scoped, tag = 'internal scratch']
  %s0 = inlined_call_operand.hbm [shape: f32[2,32], index: 0, kind: input, shape index: {}]
  %s1 = inlined_call_operand.vmem [shape: f32[1,32], index: 1, kind: input, shape index: {}]
  %s2 = inlined_call_operand.hbm [shape: f32[2,32], index: 2, kind: output, shape index: {}]
  %s3 = sld [smem:[#allocation0]]
  $region22: #{tpu_custom_call.1} parent=0
    _
  %s5 = ssub.s32 1, %s3
  %s6 = scalar_select 0, %s5, %s3
  $region1: #{tpu_custom_call.1} parent=0
    #allocation2 [shape = 'u8[1024]{0}', space=vmem, size = 0x400, scoped, tag = 'input window, operand 0, single buffered']
    #allocation3 [shape = 's32[1]{0}', space=sflag, size = 0x4, scoped, tag = 'scoped memory for tpu_custom_call.1']
    #allocation4 [shape = 's32[1]{0}', space=sflag, size = 0x4, scoped, tag = 'scoped memory for tpu_custom_call.1']
    #allocation5 [shape = 'u8[1024]{0}', space=vmem, size = 0x400, scoped, tag = 'output window, operand 0, single buffered']
    %7 = vsyncpa [#allocation3], 0
    %8 = vsyncpa [#allocation4], 0
    // Predicated region
    $region2: #{tpu_custom_call.1} parent=1 // pred_check
      _
    $region3: #{tpu_custom_call.1} parent=1 // pred_check_branch
      %10 = sbr.rel (0) target = $region5
    $region4: #{tpu_custom_call.1} parent=1 // pred_region
      %s12 = ssub.s32 32, 32
      %13 = vsyncadd [#allocation3], %s12
      %s15 = sshll.u32 [#allocation2], 4
      %s16 = int_to_ptr.vmem [resolvable:$true] %s15
      %18 = dma.hbm_to_vmem [thread:$0]  %s0, 32, %s16, [#allocation3]
    $region5: #{tpu_custom_call.1} parent=1 // pred_fallthru
      _
    // Predicated region
    $region6: #{tpu_custom_call.1} parent=1 // pred_check
      _
    $region7: #{tpu_custom_call.1} parent=1 // pred_check_branch
      %20 = sbr.rel (0) target = $region9
    $region8: #{tpu_custom_call.1} parent=1 // pred_region
      _
    $region9: #{tpu_custom_call.1} parent=1 // pred_fallthru
      _
    // Predicated region
    $region10: #{tpu_custom_call.1} parent=1 // pred_check
      _
    $region11: #{tpu_custom_call.1} parent=1 // pred_check_branch
      %22 = sbr.rel (0) target = $region13
    $region12: #{tpu_custom_call.1} parent=1 // pred_region
      %23 = dma.done [#allocation3], 32
    $region13: #{tpu_custom_call.1} parent=1 // pred_fallthru
      _
    %v24 = vld [vmem:[#allocation2] sm:$0x3]
    %v25 = vld [vmem:[%s1] sm:$0x1]
    %v27 = vlaneseq
    %v28 = vshrl.u32 %v27, 7
    %v29 = vsub.s32 0, %v28
    %v30 = vrot.slane %v25, %v29
    %v32 = vadd.f32 %v24, %v30
    %vm33 = vcmask 254976
    %34 = vst.msk [vmem:[#allocation5] sm:$0x3] %vm33, %v32
    // Predicated region
    $region14: #{tpu_custom_call.1} parent=1 // pred_check
      _
    $region15: #{tpu_custom_call.1} parent=1 // pred_check_branch
      %36 = sbr.rel (0) target = $region17
    $region16: #{tpu_custom_call.1} parent=1 // pred_region
      %s38 = ssub.s32 32, 32
      %39 = vsyncadd [#allocation4], %s38
      %s41 = sshll.u32 [#allocation5], 4
      %s42 = int_to_ptr.vmem [resolvable:$true] %s41
      %44 = dma.vmem_to_hbm [thread:$0]  %s42, 32, %s2, [#allocation4]
    $region17: #{tpu_custom_call.1} parent=1 // pred_fallthru
      _
    // Predicated region
    $region18: #{tpu_custom_call.1} parent=1 // pred_check
      _
    $region19: #{tpu_custom_call.1} parent=1 // pred_check_branch
      %46 = sbr.rel (0) target = $region21
    $region20: #{tpu_custom_call.1} parent=1 // pred_region
      %47 = dma.done [#allocation4], 32
    $region21: #{tpu_custom_call.1} parent=1 // pred_fallthru
      _
    %48 = vsyncpa [#allocation3], 1
    %49 = vsyncpa [#allocation4], 1

</llo_original>
